<compile_context>
chip_gen: v7x
topology: tpu7x:2x2x1
jax: 0.10.0
libtpu: 0.0.40
codegen_flags: <defaults>
</compile_context>

<pallas_src>
import jax
import jax.numpy as jnp
from jax import lax
from jax.experimental import pallas as pl
from jax.experimental.pallas import tpu as pltpu


_KRON_MAX_PIXELS = 1024          # kron matrix <= (1024,1024): <= 4 MiB f32


def _interp_matrix(in_size: int, out_size: int) -> jnp.ndarray:
    """PyTorch F.interpolate(mode='bilinear', align_corners=False) 1-D matrix.

    Returns M of shape (out_size, in_size) s.t. out = M @ in (along that axis).
    """
    scale = in_size / out_size
    i = jnp.arange(out_size, dtype=jnp.float32)
    src = scale * (i + 0.5) - 0.5
    src = jnp.maximum(src, 0.0)                     # PyTorch clamps negatives to 0
    x0 = jnp.floor(src).astype(jnp.int32)
    lam = src - x0.astype(jnp.float32)
    x0 = jnp.clip(x0, 0, in_size - 1)
    x1 = jnp.clip(x0 + 1, 0, in_size - 1)
    rows = jnp.arange(out_size)
    m = jnp.zeros((out_size, in_size), jnp.float32)
    m = m.at[rows, x0].add(1.0 - lam)
    m = m.at[rows, x1].add(lam)
    return m


def _vmem_budget():
    """(vmem_limit_bytes, per-step input payload target), per TPU generation."""
    cap = 64 * 1024 * 1024                       # conservative default (v7x per-TC)
    try:
        info = pltpu.get_tpu_info()
        cap_attr = getattr(info, "vmem_capacity_bytes", None)
        if cap_attr:
            cap = int(cap_attr)
    except Exception:
        pass
    vmem_limit = min((cap * 3) // 4, 100 * 1024 * 1024)
    # ~ 2x in + 2x out + scratch + double-buffered constants  ->  /7 headroom.
    payload = max(2 * 1024 * 1024, vmem_limit // 7)
    return vmem_limit, payload


def _choose_batch_tile(batch: int, bytes_per_image: int, payload_target: int,
                       min_steps: int = 4) -> int:
    """Images per grid step: as big as the payload target allows, but keep
    >= min_steps grid steps (>= 2 per v7x TensorCore) so DMA overlaps compute."""
    cap = max(1, payload_target // max(1, bytes_per_image))
    tb = max(1, min(cap, batch))
    if batch // tb < min_steps and batch >= min_steps:
        tb = max(1, batch // min_steps)
    return tb


def _kron_kernel(x_ref, k_ref, o_ref):
    """out = x @ K for TB flattened images; K = kron(C_h^T, C_w), lane-dense."""
    o_ref[...] = jnp.dot(x_ref[...], k_ref[...],
                         preferred_element_type=jnp.float32).astype(o_ref.dtype)


def _make_composed_kernel(fold_ok: bool, unroll: bool, compute_dtype):
    """out = C_h @ x @ C_w per image; W-axis matmul batch-folded when allowed."""

    def kernel(x_ref, ch_ref, cw_ref, o_ref, t_ref):
        tb, h, w = x_ref.shape
        if fold_ok:
            # One tall (TB*H, W) @ (W, W) matmul; reshape is a free view because
            # H is a multiple of the sublane pack and the lane dim is unchanged.
            t_ref[...] = jnp.dot(
                x_ref[...].reshape(tb * h, w), cw_ref[...],
                preferred_element_type=jnp.float32,
            ).reshape(tb, h, w).astype(compute_dtype)

        def body(b, carry):
            xw = t_ref[b] if fold_ok else jnp.dot(
                x_ref[b], cw_ref[...],
                preferred_element_type=jnp.float32).astype(compute_dtype)
            o_ref[b] = jnp.dot(ch_ref[...], xw,
                               preferred_element_type=jnp.float32).astype(o_ref.dtype)
            return carry

        lax.fori_loop(0, tb, body, 0, unroll=unroll)

    return kernel


def _make_factored_kernel(fold_ok: bool, unroll: bool, compute_dtype):
    """B_h @ (A_h @ x @ A_w^T) @ B_w^T per image (large spatial sizes)."""

    def kernel(x_ref, ah_ref, awT_ref, bh_ref, bwT_ref, o_ref, t_ref):
        tb, h, w = x_ref.shape
        wd = awT_ref.shape[1]
        if fold_ok:
            t_ref[...] = jnp.dot(
                x_ref[...].reshape(tb * h, w), awT_ref[...],
                preferred_element_type=jnp.float32,
            ).reshape(tb, h, wd).astype(compute_dtype)

        def body(b, carry):
            xw = t_ref[b] if fold_ok else jnp.dot(
                x_ref[b], awT_ref[...],
                preferred_element_type=jnp.float32).astype(compute_dtype)
            down = jnp.dot(ah_ref[...], xw,
                           preferred_element_type=jnp.float32).astype(compute_dtype)
            up_h = jnp.dot(bh_ref[...], down,
                           preferred_element_type=jnp.float32).astype(compute_dtype)
            o_ref[b] = jnp.dot(up_h, bwT_ref[...],
                               preferred_element_type=jnp.float32).astype(o_ref.dtype)
            return carry

        lax.fori_loop(0, tb, body, 0, unroll=unroll)

    return kernel


def do_nothing_net(y: jnp.ndarray, output_stride: int = 16, *, compose=None):
    """Pallas implementation of DoNothingNet(output_stride, mode='bilinear')."""
    n, c, h, w = y.shape
    hd = (h - 1) // output_stride + 1
    wd = (w - 1) // output_stride + 1

    vmem_limit, payload_target = _vmem_budget()
    # bf16 inputs keep the native bf16 MXU path; everything else uses f32.
    mat_dtype = jnp.bfloat16 if y.dtype == jnp.bfloat16 else jnp.float32
    itemsize = jnp.dtype(y.dtype).itemsize
    batch = n * c

    a_h = _interp_matrix(h, hd)            # (hd, H)  downsample rows
    a_wT = _interp_matrix(w, wd).T         # (W, wd)  downsample cols (transposed)
    b_h = _interp_matrix(hd, h)            # (H, hd)  upsample rows
    b_wT = _interp_matrix(wd, w).T         # (wd, W)  upsample cols (transposed)

    compiler_params = pltpu.CompilerParams(
        dimension_semantics=("parallel",),
        vmem_limit_bytes=vmem_limit)

    # --- small-spatial Kronecker path: single lane-dense batched matmul -----
    use_kron = (compose is not False) and (h * w <= _KRON_MAX_PIXELS)
    if use_kron:
        hw = h * w
        c_h = jnp.dot(b_h, a_h)                      # (H, H) roundtrip rows
        c_w = jnp.dot(a_wT, b_wT)                    # (W, W) roundtrip cols
        kmat = jnp.kron(c_h.T, c_w).astype(mat_dtype)  # (HW, HW): out_flat = x_flat @ K

        x = y.reshape(batch, hw)
        tb = _choose_batch_tile(batch, hw * itemsize, payload_target)
        # 2-D block sublane dim must be a multiple of 8 or the full batch.
        if tb < batch and tb % 8 != 0:
            tb = min(batch, ((tb + 7) // 8) * 8)
        pb = pl.cdiv(batch, tb) * tb
        if pb != batch:
            x = jnp.pad(x, ((0, pb - batch), (0, 0)))

        out = pl.pallas_call(
            _kron_kernel,
            out_shape=jax.ShapeDtypeStruct((pb, hw), y.dtype),
            grid_spec=pltpu.PrefetchScalarGridSpec(
                num_scalar_prefetch=0,
                grid=(pb // tb,),
                in_specs=[pl.BlockSpec((tb, hw), lambda i: (i, 0)),
                          pl.BlockSpec((hw, hw), lambda i: (0, 0))],
                out_specs=pl.BlockSpec((tb, hw), lambda i: (i, 0))),
            compiler_params=compiler_params,
        )(x, kmat)
        return out[:batch].reshape(n, c, h, w)

    # --- general path: composed (H,H)/(W,W) or factored 4-matrix form -------
    if compose is None:
        # Composed full-K matmuls stay memory-bound further out for bf16.
        compose = (h + w) <= (1024 if mat_dtype == jnp.bfloat16 else 512)

    x = y.reshape(batch, h, w)             # H -> sublanes, W -> lanes
    sub_pack = 16 if mat_dtype == jnp.bfloat16 else 8
    fold_ok = (h % sub_pack) == 0          # (TB,H,W)->(TB*H,W) only when free

    tb = _choose_batch_tile(batch, h * w * itemsize, payload_target)
    pb = pl.cdiv(batch, tb) * tb
    if pb != batch:
        x = jnp.pad(x, ((0, pb - batch), (0, 0), (0, 0)))
    grid = (pb // tb,)
    unroll = tb <= 8

    img_spec = pl.BlockSpec((tb, h, w), lambda i: (i, 0, 0))

    # NOTE: constant matrices are grid-invariant; pipeline_mode=pl.Buffered(1)
    # on their specs would drop the second pipeline buffer on VMEM-tight parts
    # (v7x). Omitted here since they are small at these spatial sizes.
    def const_spec(shape):
        return pl.BlockSpec(shape, lambda i: (0, 0))

    if compose:
        c_h = jnp.dot(b_h, a_h).astype(mat_dtype)     # (H, H)
        c_w = jnp.dot(a_wT, b_wT).astype(mat_dtype)   # (W, W)
        scratch_shape = (tb, h, w) if fold_ok else (1, 8, 128)
        out = pl.pallas_call(
            _make_composed_kernel(fold_ok, unroll, mat_dtype),
            out_shape=jax.ShapeDtypeStruct((pb, h, w), y.dtype),
            grid_spec=pltpu.PrefetchScalarGridSpec(
                num_scalar_prefetch=0,
                grid=grid,
                in_specs=[img_spec, const_spec((h, h)), const_spec((w, w))],
                out_specs=img_spec,
                scratch_shapes=[pltpu.VMEM(scratch_shape, mat_dtype)]),
            compiler_params=compiler_params,
        )(x, c_h, c_w)
    else:
        scratch_shape = (tb, h, wd) if fold_ok else (1, 8, 128)
        out = pl.pallas_call(
            _make_factored_kernel(fold_ok, unroll, mat_dtype),
            out_shape=jax.ShapeDtypeStruct((pb, h, w), y.dtype),
            grid_spec=pltpu.PrefetchScalarGridSpec(
                num_scalar_prefetch=0,
                grid=grid,
                in_specs=[img_spec,
                          const_spec((hd, h)), const_spec((w, wd)),
                          const_spec((h, hd)), const_spec((wd, w))],
                out_specs=img_spec,
                scratch_shapes=[pltpu.VMEM(scratch_shape, mat_dtype)]),
            compiler_params=compiler_params,
        )(x, a_h.astype(mat_dtype), a_wT.astype(mat_dtype),
          b_h.astype(mat_dtype), b_wT.astype(mat_dtype))

    return out[:batch].reshape(n, c, h, w)


def _reference(y, output_stride=16):
    # Pure-JAX reference using the same interpolation matrices (checks the kernel).
    N, C, H, W = y.shape
    hd = (H - 1) // output_stride + 1
    wd = (W - 1) // output_stride + 1
    A_h = _interp_matrix(H, hd)
    A_w = _interp_matrix(W, wd)
    B_h = _interp_matrix(hd, H)
    B_w = _interp_matrix(wd, W)
    down = jnp.einsum('oh,nchw,pw->ncop', A_h, y.astype(jnp.float32), A_w)
    up = jnp.einsum('ho,ncop,wp->nchw', B_h, down, B_w)
    return up.astype(y.dtype)


if __name__ == "__main__":
    key = jax.random.PRNGKey(0)

    # 1) NCHW input 2x4x16x16 (stride 16 -> 1x1 bottleneck): Kronecker path, f32.
    y = jax.random.normal(key, (2, 4, 16, 16), dtype=jnp.float32)
    out = jax.block_until_ready(do_nothing_net(y, output_stride=16))
    ref = _reference(y, output_stride=16)
    assert out.shape == y.shape and out.dtype == y.dtype
    assert float(jnp.max(jnp.abs(out - ref))) < 1e-4, "kron-path mismatch"

    # 2) Composed path (reshape fold + per-image H matmuls), f32.
    y2 = jax.random.normal(jax.random.PRNGKey(1), (2, 3, 48, 64), dtype=jnp.float32)
    ref2 = _reference(y2, output_stride=16)
    out2 = jax.block_until_ready(do_nothing_net(y2, output_stride=16, compose=True))
    assert out2.shape == y2.shape and out2.dtype == y2.dtype
    assert float(jnp.max(jnp.abs(out2 - ref2))) < 1e-4, "composed-path mismatch"

    # 3) Factored path (4-matrix form), f32.
    out3 = jax.block_until_ready(do_nothing_net(y2, output_stride=16, compose=False))
    assert float(jnp.max(jnp.abs(out3 - ref2))) < 1e-4, "factored-path mismatch"

    # 4) bf16 Kronecker path (native bf16 MXU), loose tolerance for bf16 rounding.
    yb = y.astype(jnp.bfloat16)
    outb = jax.block_until_ready(do_nothing_net(yb, output_stride=16))
    refb = _reference(yb.astype(jnp.float32), output_stride=16)
    assert outb.dtype == jnp.bfloat16
    assert float(jnp.max(jnp.abs(outb.astype(jnp.float32) - refb))) < 0.15, \
        "bf16 kron-path mismatch"

    # 5) bf16 composed path (exercises the bf16 scratch / bf16 second matmul).
    y2b = y2.astype(jnp.bfloat16)
    out2b = jax.block_until_ready(do_nothing_net(y2b, output_stride=16, compose=True))
    ref2b = _reference(y2b.astype(jnp.float32), output_stride=16)
    assert float(jnp.max(jnp.abs(out2b.astype(jnp.float32) - ref2b))) < 0.15, \
        "bf16 composed-path mismatch"

    print("KERNEL_OK")
</pallas_src>

<mosaic_0001>
module attributes {stable_mosaic.version = 11 : i64} {
  func.func @_kron_kernel(%arg0: i32, %arg1: memref<8x256xf32, #tpu.memory_space<vmem>>, %arg2: memref<256x256xf32, #tpu.memory_space<vmem>>, %arg3: memref<8x256xf32, #tpu.memory_space<vmem>>) attributes {dimension_semantics = [#tpu.dimension_semantics<parallel>], iteration_bounds = array<i64: 1>, scalar_prefetch = 0 : i64, scratch_operands = 0 : i64, tpu.core_type = #tpu.core_type<tc>, window_params = [{transform_indices = @transform_0, window_bounds = array<i64: 8, 256>}, {pipeline_mode = #tpu.pipeline_mode<synchronous>, transform_indices = @transform_1, window_bounds = array<i64: 256, 256>}, {transform_indices = @transform_2, window_bounds = array<i64: 8, 256>}]} {
    %c0 = arith.constant 0 : index
    %c0_0 = arith.constant 0 : index
    %0 = vector.load %arg1[%c0, %c0_0] : memref<8x256xf32, #tpu.memory_space<vmem>>, vector<8x256xf32>
    %c0_1 = arith.constant 0 : index
    %c0_2 = arith.constant 0 : index
    %1 = vector.load %arg2[%c0_1, %c0_2] : memref<256x256xf32, #tpu.memory_space<vmem>>, vector<256x256xf32>
    %cst = arith.constant dense<0.000000e+00> : vector<8x256xf32>
    %2 = tpu.matmul %0, %1, %cst {dimension_numbers = #tpu.dot_dimension_numbers<[1], [0], [0], [1], [0, 0, 1, 1], [], []>} : vector<8x256xf32>, vector<256x256xf32>, vector<8x256xf32> -> vector<8x256xf32>
    %c0_3 = arith.constant 0 : index
    %c0_4 = arith.constant 0 : index
    %3 = vector.load %arg3[%c0_3, %c0_4] : memref<8x256xf32, #tpu.memory_space<vmem>>, vector<8x256xf32>
    tpu.vector_store %arg3[%c0_3, %c0_4], %2 {strides = array<i32>} : memref<8x256xf32, #tpu.memory_space<vmem>>, vector<8x256xf32>,
    return
  }
  func.func @transform_0(%arg0: i32) -> (i32, i32) {
    %c0_i32 = arith.constant 0 : i32
    %c0_i32_0 = arith.constant 0 : i32
    return %arg0, %c0_i32 : i32, i32
  }
  func.func @transform_1(%arg0: i32) -> (i32, i32) {
    %c0_i32 = arith.constant 0 : i32
    %c0_i32_0 = arith.constant 0 : i32
    %c0_i32_1 = arith.constant 0 : i32
    return %c0_i32, %c0_i32_0 : i32, i32
  }
  func.func @transform_2(%arg0: i32) -> (i32, i32) {
    %c0_i32 = arith.constant 0 : i32
    %c0_i32_0 = arith.constant 0 : i32
    return %arg0, %c0_i32 : i32, i32
  }
}

</mosaic_0001>

<llo_original>
// kernel: tpu_custom_call.1
$region0: #{tpu_custom_call.1}
  #allocation0 [shape = 'u32[]', space=smem, size = 0x4, offset = 0x4, fixed_abs, tag = 'smem constant byte address 0x4 - core index']
  #allocation1 [shape = 'u32[144,128]{1,0:T(1,128)}', space=vmem, size = 0x12000, scoped, tag = 'internal scratch']
  %s0 = inlined_call_operand.hbm [shape: f32[8,256], index: 0, kind: input, shape index: {}]
  %s1 = inlined_call_operand.hbm [shape: f32[256,256], index: 1, kind: input, shape index: {}]
  %s2 = inlined_call_operand.hbm [shape: f32[8,256], index: 2, kind: output, shape index: {}]
  %s3 = sld [smem:[#allocation0]]
  $region26: #{tpu_custom_call.1} parent=0
    _
  %s5 = ssub.s32 1, %s3
  %s6 = scalar_select 0, %s5, %s3
  $region1: #{tpu_custom_call.1} parent=0
    #allocation2 [shape = 'u8[8192]{0}', space=vmem, size = 0x2000, scoped, tag = 'input window, operand 0, single buffered']
    #allocation3 [shape = 's32[1]{0}', space=sflag, size = 0x4, scoped, tag = 'scoped memory for tpu_custom_call.1']
    #allocation4 [shape = 's32[1]{0}', space=sflag, size = 0x4, scoped, tag = 'scoped memory for tpu_custom_call.1']
    #allocation5 [shape = 'u8[262144]{0}', space=vmem, size = 0x40000, scoped, tag = 'input window, operand 1, single buffered']
    #allocation6 [shape = 's32[1]{0}', space=sflag, size = 0x4, scoped, tag = 'scoped memory for tpu_custom_call.1']
    #allocation7 [shape = 'u8[8192]{0}', space=vmem, size = 0x2000, scoped, tag = 'output window, operand 0, single buffered']
    %7 = vsyncpa [#allocation3], 0
    %8 = vsyncpa [#allocation6], 0
    %9 = vsyncpa [#allocation4], 0
    // Predicated region
    $region2: #{tpu_custom_call.1} parent=1 // pred_check
      _
    $region3: #{tpu_custom_call.1} parent=1 // pred_check_branch
      %11 = sbr.rel (0) target = $region5
    $region4: #{tpu_custom_call.1} parent=1 // pred_region
      %s13 = ssub.s32 256, 256
      %14 = vsyncadd [#allocation3], %s13
      %s16 = sshll.u32 [#allocation2], 4
      %s17 = int_to_ptr.vmem [resolvable:$true] %s16
      %19 = dma.hbm_to_vmem [thread:$0]  %s0, 256, %s17, [#allocation3]
    $region5: #{tpu_custom_call.1} parent=1 // pred_fallthru
      _
    // Predicated region
    $region6: #{tpu_custom_call.1} parent=1 // pred_check
      _
    $region7: #{tpu_custom_call.1} parent=1 // pred_check_branch
      %21 = sbr.rel (0) target = $region9
    $region8: #{tpu_custom_call.1} parent=1 // pred_region
      %s23 = ssub.s32 8192, 8192
      %24 = vsyncadd [#allocation6], %s23
      %s25 = sshll.u32 [#allocation5], 4
      %s26 = int_to_ptr.vmem [resolvable:$true] %s25
      %31 = dma.hbm_to_vmem [thread:$0]  %s1, 8192, %s26, [#allocation6], 256, 256, 16
    $region9: #{tpu_custom_call.1} parent=1 // pred_fallthru
      _
    // Predicated region
    $region10: #{tpu_custom_call.1} parent=1 // pred_check
      _
    $region11: #{tpu_custom_call.1} parent=1 // pred_check_branch
      %33 = sbr.rel (0) target = $region13
    $region12: #{tpu_custom_call.1} parent=1 // pred_region
      %34 = dma.done [#allocation3], 256
    $region13: #{tpu_custom_call.1} parent=1 // pred_fallthru
      _
    // Predicated region
    $region14: #{tpu_custom_call.1} parent=1 // pred_check
      _
    $region15: #{tpu_custom_call.1} parent=1 // pred_check_branch
      %36 = sbr.rel (0) target = $region17
    $region16: #{tpu_custom_call.1} parent=1 // pred_region
      %37 = dma.done [#allocation6], 8192
    $region17: #{tpu_custom_call.1} parent=1 // pred_fallthru
      _
    %v38 = vld [vmem:[#allocation2] sm:$0xff]
    %v39 = vld [vmem:[#allocation2 + $0x8] sm:$0xff]
    %v40 = vld [vmem:[#allocation5] sm:$0xff]
    %v41 = vld [vmem:[#allocation5 + $0x8] sm:$0xff]
    %v42 = vld [vmem:[#allocation5 + $0x10] sm:$0xff]
    %v43 = vld [vmem:[#allocation5 + $0x18] sm:$0xff]
    %v44 = vld [vmem:[#allocation5 + $0x20] sm:$0xff]
    %v45 = vld [vmem:[#allocation5 + $0x28] sm:$0xff]
    %v46 = vld [vmem:[#allocation5 + $0x30] sm:$0xff]
    %v47 = vld [vmem:[#allocation5 + $0x38] sm:$0xff]
    %v48 = vld [vmem:[#allocation5 + $0x40] sm:$0xff]
    %v49 = vld [vmem:[#allocation5 + $0x48] sm:$0xff]
    %v50 = vld [vmem:[#allocation5 + $0x50] sm:$0xff]
    %v51 = vld [vmem:[#allocation5 + $0x58] sm:$0xff]
    %v52 = vld [vmem:[#allocation5 + $0x60] sm:$0xff]
    %v53 = vld [vmem:[#allocation5 + $0x68] sm:$0xff]
    %v54 = vld [vmem:[#allocation5 + $0x70] sm:$0xff]
    %v55 = vld [vmem:[#allocation5 + $0x78] sm:$0xff]
    %v56 = vld [vmem:[#allocation5 + $0x80] sm:$0xff]
    %v57 = vld [vmem:[#allocation5 + $0x88] sm:$0xff]
    %v58 = vld [vmem:[#allocation5 + $0x90] sm:$0xff]
    %v59 = vld [vmem:[#allocation5 + $0x98] sm:$0xff]
    %v60 = vld [vmem:[#allocation5 + $0xa0] sm:$0xff]
    %v61 = vld [vmem:[#allocation5 + $0xa8] sm:$0xff]
    %v62 = vld [vmem:[#allocation5 + $0xb0] sm:$0xff]
    %v63 = vld [vmem:[#allocation5 + $0xb8] sm:$0xff]
    %v64 = vld [vmem:[#allocation5 + $0xc0] sm:$0xff]
    %v65 = vld [vmem:[#allocation5 + $0xc8] sm:$0xff]
    %v66 = vld [vmem:[#allocation5 + $0xd0] sm:$0xff]
    %v67 = vld [vmem:[#allocation5 + $0xd8] sm:$0xff]
    %v68 = vld [vmem:[#allocation5 + $0xe0] sm:$0xff]
    %v69 = vld [vmem:[#allocation5 + $0xe8] sm:$0xff]
    %v70 = vld [vmem:[#allocation5 + $0xf0] sm:$0xff]
    %v71 = vld [vmem:[#allocation5 + $0xf8] sm:$0xff]
    %v72 = vld [vmem:[#allocation5 + $0x100] sm:$0xff]
    %v73 = vld [vmem:[#allocation5 + $0x108] sm:$0xff]
    %v74 = vld [vmem:[#allocation5 + $0x110] sm:$0xff]
    %v75 = vld [vmem:[#allocation5 + $0x118] sm:$0xff]
    %v76 = vld [vmem:[#allocation5 + $0x120] sm:$0xff]
    %v77 = vld [vmem:[#allocation5 + $0x128] sm:$0xff]
    %v78 = vld [vmem:[#allocation5 + $0x130] sm:$0xff]
    %v79 = vld [vmem:[#allocation5 + $0x138] sm:$0xff]
    %v80 = vld [vmem:[#allocation5 + $0x140] sm:$0xff]
    %v81 = vld [vmem:[#allocation5 + $0x148] sm:$0xff]
    %v82 = vld [vmem:[#allocation5 + $0x150] sm:$0xff]
    %v83 = vld [vmem:[#allocation5 + $0x158] sm:$0xff]
    %v84 = vld [vmem:[#allocation5 + $0x160] sm:$0xff]
    %v85 = vld [vmem:[#allocation5 + $0x168] sm:$0xff]
    %v86 = vld [vmem:[#allocation5 + $0x170] sm:$0xff]
    %v87 = vld [vmem:[#allocation5 + $0x178] sm:$0xff]
    %v88 = vld [vmem:[#allocation5 + $0x180] sm:$0xff]
    %v89 = vld [vmem:[#allocation5 + $0x188] sm:$0xff]
    %v90 = vld [vmem:[#allocation5 + $0x190] sm:$0xff]
    %v91 = vld [vmem:[#allocation5 + $0x198] sm:$0xff]
    %v92 = vld [vmem:[#allocation5 + $0x1a0] sm:$0xff]
    %v93 = vld [vmem:[#allocation5 + $0x1a8] sm:$0xff]
    %v94 = vld [vmem:[#allocation5 + $0x1b0] sm:$0xff]
    %v95 = vld [vmem:[#allocation5 + $0x1b8] sm:$0xff]
    %v96 = vld [vmem:[#allocation5 + $0x1c0] sm:$0xff]
    %v97 = vld [vmem:[#allocation5 + $0x1c8] sm:$0xff]
    %v98 = vld [vmem:[#allocation5 + $0x1d0] sm:$0xff]
    %v99 = vld [vmem:[#allocation5 + $0x1d8] sm:$0xff]
    %v100 = vld [vmem:[#allocation5 + $0x1e0] sm:$0xff]
    %v101 = vld [vmem:[#allocation5 + $0x1e8] sm:$0xff]
    %v102 = vld [vmem:[#allocation5 + $0x1f0] sm:$0xff]
    %v103 = vld [vmem:[#allocation5 + $0x1f8] sm:$0xff]
    %104 = vmatprep.subr.mxu0 %v41
    %105 = vmatpush1.msra.mxu0 %v40
    %106 = vmatprep.subr.mxu0 %v43
    %107 = vmatpush1.msra.mxu0 %v42
    %108 = vmatprep.subr.mxu0 %v45
    %109 = vmatpush1.msra.mxu0 %v44
    %110 = vmatprep.subr.mxu0 %v47
    %111 = vmatpush1.msra.mxu0 %v46
    %112 = vmatprep.subr.mxu0 %v49
    %113 = vmatpush1.msra.mxu0 %v48
    %114 = vmatprep.subr.mxu0 %v51
    %115 = vmatpush1.msra.mxu0 %v50
    %116 = vmatprep.subr.mxu0 %v53
    %117 = vmatpush1.msra.mxu0 %v52
    %118 = vmatprep.subr.mxu0 %v55
    %119 = vmatpush1.msra.mxu0 %v54
    %120 = vmatprep.subr.mxu0 %v57
    %121 = vmatpush1.msra.mxu0 %v56
    %122 = vmatprep.subr.mxu0 %v59
    %123 = vmatpush1.msra.mxu0 %v58
    %124 = vmatprep.subr.mxu0 %v61
    %125 = vmatpush1.msra.mxu0 %v60
    %126 = vmatprep.subr.mxu0 %v63
    %127 = vmatpush1.msra.mxu0 %v62
    %128 = vmatprep.subr.mxu0 %v65
    %129 = vmatpush1.msra.mxu0 %v64
    %130 = vmatprep.subr.mxu0 %v67
    %131 = vmatpush1.msra.mxu0 %v66
    %132 = vmatprep.subr.mxu0 %v69
    %133 = vmatpush1.msra.mxu0 %v68
    %134 = vmatprep.subr.mxu0 %v71
    %135 = vmatpush1.msra.mxu0 %v70
    %136 = vmatprep.subr.mxu0 %v73
    %137 = vmatpush1.msra.mxu0 %v72
    %138 = vmatprep.subr.mxu0 %v75
    %139 = vmatpush1.msra.mxu0 %v74
    %140 = vmatprep.subr.mxu0 %v77
    %141 = vmatpush1.msra.mxu0 %v76
    %142 = vmatprep.subr.mxu0 %v79
    %143 = vmatpush1.msra.mxu0 %v78
    %144 = vmatprep.subr.mxu0 %v81
    %145 = vmatpush1.msra.mxu0 %v80
    %146 = vmatprep.subr.mxu0 %v83
    %147 = vmatpush1.msra.mxu0 %v82
    %148 = vmatprep.subr.mxu0 %v85
    %149 = vmatpush1.msra.mxu0 %v84
    %150 = vmatprep.subr.mxu0 %v87
    %151 = vmatpush1.msra.mxu0 %v86
    %152 = vmatprep.subr.mxu0 %v89
    %153 = vmatpush1.msra.mxu0 %v88
    %154 = vmatprep.subr.mxu0 %v91
    %155 = vmatpush1.msra.mxu0 %v90
    %156 = vmatprep.subr.mxu0 %v93
    %157 = vmatpush1.msra.mxu0 %v92
    %158 = vmatprep.subr.mxu0 %v95
    %159 = vmatpush1.msra.mxu0 %v94
    %160 = vmatprep.subr.mxu0 %v97
    %161 = vmatpush1.msra.mxu0 %v96
    %162 = vmatprep.subr.mxu0 %v99
    %163 = vmatpush1.msra.mxu0 %v98
    %164 = vmatprep.subr.mxu0 %v101
    %165 = vmatpush1.msra.mxu0 %v100
    %166 = vmatprep.subr.mxu0 %v103
    %167 = vmatpush1.msra.mxu0 %v102
    %168 = vmatprep.mubr.f32.mxu0 %v39
    %169 = vmatmul.mubr.f32.gmra.mrb[0].mxu0 %v38
    %v170 = vpop.f32.mrb[0].mxu0
    %v171 = vadd.f32 0.0, %v170
    %v172 = vpop.f32.mrb[0].mxu0
    %v173 = vadd.f32 0.0, %v172
    %174 = vdwg.mxu0
    %175 = vst [vmem:[#allocation7] sm:$0xff] %v171
    %176 = vst [vmem:[#allocation7 + $0x8] sm:$0xff] %v173
    // Predicated region
    $region18: #{tpu_custom_call.1} parent=1 // pred_check
      _
    $region19: #{tpu_custom_call.1} parent=1 // pred_check_branch
      %178 = sbr.rel (0) target = $region21
    $region20: #{tpu_custom_call.1} parent=1 // pred_region
      %s180 = ssub.s32 256, 256
      %181 = vsyncadd [#allocation4], %s180
      %s183 = sshll.u32 [#allocation7], 4
      %s184 = int_to_ptr.vmem [resolvable:$true] %s183
      %186 = dma.vmem_to_hbm [thread:$0]  %s184, 256, %s2, [#allocation4]
    $region21: #{tpu_custom_call.1} parent=1 // pred_fallthru
      _
    // Predicated region
    $region22: #{tpu_custom_call.1} parent=1 // pred_check
      _
    $region23: #{tpu_custom_call.1} parent=1 // pred_check_branch
      %188 = sbr.rel (0) target = $region25
    $region24: #{tpu_custom_call.1} parent=1 // pred_region
      %189 = dma.done [#allocation4], 256
    $region25: #{tpu_custom_call.1} parent=1 // pred_fallthru
      _
    %190 = vsyncpa [#allocation3], 1
    %191 = vsyncpa [#allocation6], 1
    %192 = vsyncpa [#allocation4], 1

</llo_original>
